<compile_context>
chip_gen: v6e
topology: v6e:2x2x1
jax: 0.10.0
libtpu: 0.0.40
codegen_flags: <defaults>
</compile_context>

<pallas_src>
import jax
import jax.numpy as jnp
from jax.experimental import pallas as pl
from jax.experimental.pallas import tpu as pltpu

_LANE = 128
_SUBLANE = 8


def _round_up(x: int, m: int) -> int:
    return ((x + m - 1) // m) * m


def _hw_config():
    """Generation-aware sizing: (core splits, vmem_limit_bytes, per-input block budget)."""
    try:
        info = pltpu.get_tpu_info()
        vmem_cap = int(getattr(info, "vmem_capacity_bytes", 64 * 1024 * 1024))
    except Exception:  # non-TPU tracing / interpret fallbacks
        vmem_cap = 64 * 1024 * 1024
    if vmem_cap >= 100 * 1024 * 1024:
        # v5e / v6e: 128 MiB physical VMEM, single TensorCore.
        return 1, 96 * 1024 * 1024, 8 * 1024 * 1024
    # v7x: 64 MiB physical VMEM, 2 TensorCores per chip.
    return 2, 48 * 1024 * 1024, 5 * 1024 * 1024


def byol_loss(z_i: jax.Array, z_j: jax.Array, temperature: float = 0.5) -> jax.Array:
    """BYOL loss forward. `temperature` is unused in the reference forward; kept for parity."""
    assert z_i.shape == z_j.shape and z_i.ndim == 2
    B, D = z_i.shape
    nc, vmem_limit, block_budget = _hw_config()

    # Batch-tile sizing: multiple of 8 rows (or the full batch), sized so the
    # double-buffered input blocks plus in-kernel f32 temporaries (inputs are
    # upcast inside the kernel) fit the per-generation VMEM budget.
    row_bytes = D * max(4, jnp.dtype(z_i.dtype).itemsize)
    tb_budget = max(_SUBLANE, (block_budget // row_bytes) // _SUBLANE * _SUBLANE)
    tb_cap = _round_up(pl.cdiv(B, nc), _SUBLANE)
    tb = min(tb_budget, tb_cap)
    if tb >= B:
        tb = B  # block dim equal to the full array dim is always legal
    n_blocks = pl.cdiv(B, tb)
    nc = max(1, min(nc, n_blocks))
    steps = pl.cdiv(n_blocks, nc)

    def kernel(zi_ref, zj_ref, out_ref, acc_ref):
        c = pl.program_id(0)
        s = pl.program_id(1)

        @pl.when(s == 0)
        def _():
            acc_ref[...] = jnp.zeros_like(acc_ref)

        zi = zi_ref[...].astype(jnp.float32)
        zj = zj_ref[...].astype(jnp.float32)

        eps = jnp.float32(1e-12)  # matches torch.nn.functional.normalize default eps

        # Fused normalization: three per-row reductions instead of two full-tile divides.
        dot = jnp.sum(zi * zj, axis=-1, keepdims=True)            # [tb, 1]
        ni = jnp.sqrt(jnp.sum(zi * zi, axis=-1, keepdims=True))   # [tb, 1]
        nj = jnp.sqrt(jnp.sum(zj * zj, axis=-1, keepdims=True))   # [tb, 1]
        cos = dot / (jnp.maximum(ni, eps) * jnp.maximum(nj, eps))

        # Ragged-edge / duplicated-grid-point mask: rows whose global (unclamped)
        # index is >= B read unspecified data and must contribute exactly 0.
        row0 = (c * steps + s) * tb
        rows = row0 + jax.lax.broadcasted_iota(jnp.int32, cos.shape, 0)
        cos = jnp.where(rows < B, cos, jnp.float32(0.0))

        acc_ref[...] += jnp.sum(cos)

        @pl.when(s == pl.num_programs(1) - 1)
        def _():
            out_ref[...] = jnp.broadcast_to(acc_ref[...], out_ref.shape)

    # Input index map: grid point (c, s) handles row-block c*steps + s.  When the
    # rectangular (nc, steps) grid has more points than row-blocks, clamp the block
    # index (the extra point's rows are masked to 0 inside the kernel).
    if nc * steps == n_blocks:
        in_map = lambda c, s: (c * steps + s, 0)
    else:
        last_blk = n_blocks - 1
        in_map = lambda c, s: (jnp.minimum(c * steps + s, last_blk), 0)

    out = pl.pallas_call(
        kernel,
        out_shape=jax.ShapeDtypeStruct((nc * _SUBLANE, _LANE), jnp.float32),
        grid_spec=pltpu.PrefetchScalarGridSpec(
            num_scalar_prefetch=0,
            grid=(nc, steps),
            in_specs=[
                pl.BlockSpec((tb, D), in_map),
                pl.BlockSpec((tb, D), in_map),
            ],
            out_specs=pl.BlockSpec((_SUBLANE, _LANE), lambda c, s: (c, 0)),
            scratch_shapes=[pltpu.VMEM((1, 1), jnp.float32)],
        ),
        compiler_params=pltpu.CompilerParams(
            dimension_semantics=("parallel", "arbitrary"),
            vmem_limit_bytes=vmem_limit,
        ),
    )(z_i, z_j)

    # Per-core partial sums of cos live at [c, 0, 0]; finalize scalar math here.
    partial_sums = out.reshape(nc, _SUBLANE, _LANE)[:, 0, 0]
    return 2.0 - 2.0 * (jnp.sum(partial_sums) / jnp.float32(B))


if __name__ == "__main__":
    key = jax.random.PRNGKey(0)
    k1, k2, k3, k4, k5, k6 = jax.random.split(key, 6)

    def ref(zi, zj):
        zi = zi.astype(jnp.float32)
        zj = zj.astype(jnp.float32)
        eps = 1e-12
        zi_n = zi / jnp.maximum(jnp.linalg.norm(zi, axis=1, keepdims=True), eps)
        zj_n = zj / jnp.maximum(jnp.linalg.norm(zj, axis=1, keepdims=True), eps)
        return jnp.mean(2.0 - 2.0 * jnp.sum(zi_n * zj_n, axis=-1))

    # Small shape consistent with the module (batch of projection vectors).
    B, D = 8, 32
    z_i = jax.random.normal(k1, (B, D), dtype=jnp.float32)
    z_j = jax.random.normal(k2, (B, D), dtype=jnp.float32)
    loss = byol_loss(z_i, z_j)
    jax.block_until_ready(loss)
    assert jnp.allclose(loss, ref(z_i, z_j), atol=1e-5, rtol=1e-5), (loss, ref(z_i, z_j))

    # Non-aligned shape: exercises the no-pad ragged-D block and ragged-row masking.
    B2, D2 = 300, 257
    z_i2 = jax.random.normal(k3, (B2, D2), dtype=jnp.float32)
    z_j2 = jax.random.normal(k4, (B2, D2), dtype=jnp.float32)
    loss2 = byol_loss(z_i2, z_j2)
    jax.block_until_ready(loss2)
    assert jnp.allclose(loss2, ref(z_i2, z_j2), atol=1e-4, rtol=1e-5), (loss2, ref(z_i2, z_j2))

    # Larger shape: exercises the multi-step pipelined reduction, the partial last
    # batch tile, and (on v7x) the 2-way core split with clamped index map.
    B3, D3 = 4096, 768
    z_i3 = jax.random.normal(k5, (B3, D3), dtype=jnp.float32)
    z_j3 = jax.random.normal(k6, (B3, D3), dtype=jnp.float32)
    loss3 = byol_loss(z_i3, z_j3)
    jax.block_until_ready(loss3)
    assert jnp.allclose(loss3, ref(z_i3, z_j3), atol=1e-4, rtol=1e-5), (loss3, ref(z_i3, z_j3))

    print("KERNEL_OK")
</pallas_src>

<mosaic_0001>
module attributes {stable_mosaic.version = 11 : i64} {
  func.func @kernel(%arg0: i32, %arg1: i32, %arg2: memref<8x32xf32, #tpu.memory_space<vmem>>, %arg3: memref<8x32xf32, #tpu.memory_space<vmem>>, %arg4: memref<8x128xf32, #tpu.memory_space<vmem>>, %arg5: memref<1x1xf32, #tpu.memory_space<vmem>>) attributes {dimension_semantics = [#tpu.dimension_semantics<parallel>, #tpu.dimension_semantics<arbitrary>], iteration_bounds = array<i64: 1, 1>, scalar_prefetch = 0 : i64, scratch_operands = 1 : i64, tpu.core_type = #tpu.core_type<tc>, window_params = [{transform_indices = @transform_0, window_bounds = array<i64: 8, 32>}, {transform_indices = @transform_1, window_bounds = array<i64: 8, 32>}, {transform_indices = @transform_2, window_bounds = array<i64: 8, 128>}]} {
    %c0_i32 = arith.constant 0 : i32
    %0 = arith.cmpi eq, %arg1, %c0_i32 : i32
    %1 = arith.extui %0 : i1 to i32
    %c0_i32_0 = arith.constant 0 : i32
    %2 = arith.cmpi ne, %1, %c0_i32_0 : i32
    scf.if %2 {
      %cst_17 = arith.constant 0.000000e+00 : f32
      %43 = vector.broadcast %cst_17 : f32 to vector<1x1xf32>
      %c0_18 = arith.constant 0 : index
      %c0_19 = arith.constant 0 : index
      %44 = vector.load %arg5[%c0_18, %c0_19] : memref<1x1xf32, #tpu.memory_space<vmem>>, vector<1x1xf32>
      tpu.vector_store %arg5[%c0_18, %c0_19], %43 {strides = array<i32>} : memref<1x1xf32, #tpu.memory_space<vmem>>, vector<1x1xf32>,
    } else {
    }
    %c0 = arith.constant 0 : index
    %c0_1 = arith.constant 0 : index
    %3 = vector.load %arg2[%c0, %c0_1] : memref<8x32xf32, #tpu.memory_space<vmem>>, vector<8x32xf32>
    %c0_2 = arith.constant 0 : index
    %c0_3 = arith.constant 0 : index
    %4 = vector.load %arg3[%c0_2, %c0_3] : memref<8x32xf32, #tpu.memory_space<vmem>>, vector<8x32xf32>
    %5 = arith.mulf %3, %4 : vector<8x32xf32>
    %cst = arith.constant dense<0.000000e+00> : vector<8xf32>
    %6 = vector.multi_reduction <add>, %5, %cst [1] : vector<8x32xf32> to vector<8xf32>
    %7 = vector.shape_cast %6 : vector<8xf32> to vector<8x1xf32>
    %8 = arith.mulf %3, %3 : vector<8x32xf32>
    %cst_4 = arith.constant dense<0.000000e+00> : vector<8xf32>
    %9 = vector.multi_reduction <add>, %8, %cst_4 [1] : vector<8x32xf32> to vector<8xf32>
    %10 = vector.shape_cast %9 : vector<8xf32> to vector<8x1xf32>
    %11 = math.sqrt %10 : vector<8x1xf32>
    %12 = arith.mulf %4, %4 : vector<8x32xf32>
    %cst_5 = arith.constant dense<0.000000e+00> : vector<8xf32>
    %13 = vector.multi_reduction <add>, %12, %cst_5 [1] : vector<8x32xf32> to vector<8xf32>
    %14 = vector.shape_cast %13 : vector<8xf32> to vector<8x1xf32>
    %15 = math.sqrt %14 : vector<8x1xf32>
    %cst_6 = arith.constant 9.99999996E-13 : f32
    %16 = vector.broadcast %cst_6 : f32 to vector<8x1xf32>
    %17 = arith.maximumf %11, %16 : vector<8x1xf32>
    %cst_7 = arith.constant 9.99999996E-13 : f32
    %18 = vector.broadcast %cst_7 : f32 to vector<8x1xf32>
    %19 = arith.maximumf %15, %18 : vector<8x1xf32>
    %20 = arith.mulf %17, %19 : vector<8x1xf32>
    %21 = arith.divf %7, %20 : vector<8x1xf32>
    %c1_i32 = arith.constant 1 : i32
    %22 = arith.muli %arg0, %c1_i32 : i32
    %23 = arith.addi %22, %arg1 : i32
    %c8_i32 = arith.constant 8 : i32
    %24 = arith.muli %23, %c8_i32 : i32
    %25 = tpu.iota {dimensions = array<i32: 0>} : vector<8x1xi32>
    %26 = vector.broadcast %24 : i32 to vector<8x1xi32>
    %27 = arith.addi %26, %25 : vector<8x1xi32>
    %c8_i32_8 = arith.constant 8 : i32
    %28 = vector.broadcast %c8_i32_8 : i32 to vector<8x1xi32>
    %29 = arith.cmpi slt, %27, %28 : vector<8x1xi32>
    %cst_9 = arith.constant 0.000000e+00 : f32
    %30 = vector.broadcast %cst_9 : f32 to vector<8x1xf32>
    %31 = arith.select %29, %21, %30 : vector<8x1xi1>, vector<8x1xf32>
    %c0_10 = arith.constant 0 : index
    %c0_11 = arith.constant 0 : index
    %32 = vector.load %arg5[%c0_10, %c0_11] : memref<1x1xf32, #tpu.memory_space<vmem>>, vector<1x1xf32>
    %33 = vector.shape_cast %31 : vector<8x1xf32> to vector<1x8x1xf32>
    %cst_12 = arith.constant dense<0.000000e+00> : vector<1xf32>
    %34 = vector.multi_reduction <add>, %33, %cst_12 [1, 2] : vector<1x8x1xf32> to vector<1xf32>
    %35 = vector.shape_cast %34 : vector<1xf32> to vector<1x1x1xf32>
    %36 = vector.extract %35[0, 0, 0] : f32 from vector<1x1x1xf32>
    %37 = vector.broadcast %36 : f32 to vector<1x1xf32>
    %38 = arith.addf %32, %37 : vector<1x1xf32>
    %c0_13 = arith.constant 0 : index
    %c0_14 = arith.constant 0 : index
    %39 = vector.load %arg5[%c0_13, %c0_14] : memref<1x1xf32, #tpu.memory_space<vmem>>, vector<1x1xf32>
    tpu.vector_store %arg5[%c0_13, %c0_14], %38 {strides = array<i32>} : memref<1x1xf32, #tpu.memory_space<vmem>>, vector<1x1xf32>,
    %c0_i32_15 = arith.constant 0 : i32
    %40 = arith.cmpi eq, %arg1, %c0_i32_15 : i32
    %41 = arith.extui %40 : i1 to i32
    %c0_i32_16 = arith.constant 0 : i32
    %42 = arith.cmpi ne, %41, %c0_i32_16 : i32
    scf.if %42 {
      %c0_17 = arith.constant 0 : index
      %c0_18 = arith.constant 0 : index
      %43 = vector.load %arg5[%c0_17, %c0_18] : memref<1x1xf32, #tpu.memory_space<vmem>>, vector<1x1xf32>
      %44 = vector.shape_cast %43 : vector<1x1xf32> to vector<1x1xf32>
      %45 = vector.broadcast %44 : vector<1x1xf32> to vector<8x128xf32>
      %c0_19 = arith.constant 0 : index
      %c0_20 = arith.constant 0 : index
      %46 = vector.load %arg4[%c0_19, %c0_20] : memref<8x128xf32, #tpu.memory_space<vmem>>, vector<8x128xf32>
      tpu.vector_store %arg4[%c0_19, %c0_20], %45 {strides = array<i32>} : memref<8x128xf32, #tpu.memory_space<vmem>>, vector<8x128xf32>,
    } else {
    }
    return
  }
  func.func @transform_0(%arg0: i32, %arg1: i32) -> (i32, i32) {
    %c1_i32 = arith.constant 1 : i32
    %0 = arith.muli %arg0, %c1_i32 : i32
    %1 = arith.addi %0, %arg1 : i32
    %c0_i32 = arith.constant 0 : i32
    %c0_i32_0 = arith.constant 0 : i32
    return %1, %c0_i32 : i32, i32
  }
  func.func @transform_1(%arg0: i32, %arg1: i32) -> (i32, i32) {
    %c1_i32 = arith.constant 1 : i32
    %0 = arith.muli %arg0, %c1_i32 : i32
    %1 = arith.addi %0, %arg1 : i32
    %c0_i32 = arith.constant 0 : i32
    %c0_i32_0 = arith.constant 0 : i32
    return %1, %c0_i32 : i32, i32
  }
  func.func @transform_2(%arg0: i32, %arg1: i32) -> (i32, i32) {
    %c0_i32 = arith.constant 0 : i32
    %c0_i32_0 = arith.constant 0 : i32
    return %arg0, %c0_i32 : i32, i32
  }
}

</mosaic_0001>

<llo_original>
// kernel: tpu_custom_call.1
$region0: #{tpu_custom_call.1}
  #allocation0 [shape = 'u32[]', space=smem, size = 0x4, offset = 0x4, fixed_abs, tag = 'smem constant byte address 0x4 - core index']
  #allocation1 [shape = 'u32[144,128]{1,0:T(1,128)}', space=vmem, size = 0x12000, scoped, tag = 'internal scratch']
  #allocation2 [shape = 'f32[1,1]{1,0:T(1,128)}', space=vmem, size = 0x200, scoped, tag = 'scratch operand']
  %s0 = inlined_call_operand.hbm [shape: f32[8,32], index: 0, kind: input, shape index: {}]
  %s1 = inlined_call_operand.hbm [shape: f32[8,32], index: 1, kind: input, shape index: {}]
  %s2 = inlined_call_operand.hbm [shape: f32[8,128], index: 2, kind: output, shape index: {}]
  %s3 = sld [smem:[#allocation0]]
  $region34: #{tpu_custom_call.1} parent=0
    _
  %s5 = ssub.s32 1, %s3
  %s6 = scalar_select 0, %s5, %s3
  $region1: #{tpu_custom_call.1} parent=0
    #allocation3 [shape = 'u8[4096]{0}', space=vmem, size = 0x1000, scoped, tag = 'input window, operand 0, single buffered']
    #allocation4 [shape = 's32[1]{0}', space=sflag, size = 0x4, scoped, tag = 'scoped memory for tpu_custom_call.1']
    #allocation5 [shape = 's32[1]{0}', space=sflag, size = 0x4, scoped, tag = 'scoped memory for tpu_custom_call.1']
    #allocation6 [shape = 'u8[4096]{0}', space=vmem, size = 0x1000, scoped, tag = 'input window, operand 1, single buffered']
    #allocation7 [shape = 's32[1]{0}', space=sflag, size = 0x4, scoped, tag = 'scoped memory for tpu_custom_call.1']
    #allocation8 [shape = 'u8[4096]{0}', space=vmem, size = 0x1000, scoped, tag = 'output window, operand 0, single buffered']
    %7 = vsyncpa [#allocation4], 0
    %8 = vsyncpa [#allocation7], 0
    %9 = vsyncpa [#allocation5], 0
    // Predicated region
    $region2: #{tpu_custom_call.1} parent=1 // pred_check
      _
    $region3: #{tpu_custom_call.1} parent=1 // pred_check_branch
      %11 = sbr.rel (0) target = $region5
    $region4: #{tpu_custom_call.1} parent=1 // pred_region
      %s12 = sadd.s32 0, 0
      %s14 = ssub.s32 128, 128
      %15 = vsyncadd [#allocation4], %s14
      %s16 = smul.addr %s12, 128
      %s17 = scalar_lea.hbm %s0, %s16
      %s19 = sshll.u32 [#allocation3], 4
      %s20 = int_to_ptr.vmem [resolvable:$true] %s19
      %22 = dma.hbm_to_vmem [thread:$0]  %s17, 128, %s20, [#allocation4]
    $region5: #{tpu_custom_call.1} parent=1 // pred_fallthru
      _
    // Predicated region
    $region6: #{tpu_custom_call.1} parent=1 // pred_check
      _
    $region7: #{tpu_custom_call.1} parent=1 // pred_check_branch
      %24 = sbr.rel (0) target = $region9
    $region8: #{tpu_custom_call.1} parent=1 // pred_region
      %s25 = sadd.s32 0, 0
      %s27 = ssub.s32 128, 128
      %28 = vsyncadd [#allocation7], %s27
      %s29 = smul.addr %s25, 128
      %s30 = scalar_lea.hbm %s1, %s29
      %s32 = sshll.u32 [#allocation6], 4
      %s33 = int_to_ptr.vmem [resolvable:$true] %s32
      %35 = dma.hbm_to_vmem [thread:$0]  %s30, 128, %s33, [#allocation7]
    $region9: #{tpu_custom_call.1} parent=1 // pred_fallthru
      _
    // Predicated region
    $region10: #{tpu_custom_call.1} parent=1 // pred_check
      _
    $region11: #{tpu_custom_call.1} parent=1 // pred_check_branch
      %37 = sbr.rel (0) target = $region13
    $region12: #{tpu_custom_call.1} parent=1 // pred_region
      %38 = dma.done [#allocation4], 128
    $region13: #{tpu_custom_call.1} parent=1 // pred_fallthru
      _
    // Predicated region
    $region14: #{tpu_custom_call.1} parent=1 // pred_check
      _
    $region15: #{tpu_custom_call.1} parent=1 // pred_check_branch
      %40 = sbr.rel (0) target = $region17
    $region16: #{tpu_custom_call.1} parent=1 // pred_region
      %41 = dma.done [#allocation7], 128
    $region17: #{tpu_custom_call.1} parent=1 // pred_fallthru
      _
    %s42 = sadd.s32 0, 0
    %s43 = sadd.s32 0, 0
    %p44 = scmp.eq.s32.totalorder 0, 0
    // Predicated region
    $region18: #{tpu_custom_call.1} parent=1 // pred_check
      %p45 = pneg %p44
    $region19: #{tpu_custom_call.1} parent=1 // pred_check_branch
      %47 = sbr.rel (%p45) target = $region21
    $region20: #{tpu_custom_call.1} parent=1 // pred_region
      %vm48 = vcmask 0
      %49 = vst.msk [vmem:[#allocation2] sm:$0x1] %vm48, 0.0
    $region21: #{tpu_custom_call.1} parent=1 // pred_fallthru
      _
    %v50 = vld [vmem:[#allocation3] sm:$0xff]
    %v51 = vld [vmem:[#allocation6] sm:$0xff]
    %v52 = vmul.f32 %v50, %v51
    %vm53 = vcmask 261120
    %v54 = vsel %vm53, %v52, 0.0
    %55 = vadd.xlane.f32.xlu0 %v54
    %v56 = vpop.xlane.xlu0 %55
    %v57 = vmul.f32 %v50, %v50
    %v58 = vsel %vm53, %v57, 0.0
    %59 = vadd.xlane.f32.xlu0 %v58
    %v60 = vpop.xlane.xlu0 %59
    %v61 = vrsqrt.pop %v60
    %v62 = vmul.f32 %v60, %v61
    %vm63 = vcmp.eq.f32.partialorder %v60, inf
    %v64 = vsel %vm63, %v60, %v62
    %vm65 = vcmp.eq.f32.partialorder %v60, 0.0
    %v66 = vand.u32 %v60, 2147483648
    %v67 = vsel %vm65, %v66, %v64
    %v68 = vmul.f32 %v51, %v51
    %v69 = vsel %vm53, %v68, 0.0
    %70 = vadd.xlane.f32.xlu0 %v69
    %v71 = vpop.xlane.xlu0 %70
    %v72 = vrsqrt.pop %v71
    %v73 = vmul.f32 %v71, %v72
    %vm74 = vcmp.eq.f32.partialorder %v71, inf
    %v75 = vsel %vm74, %v71, %v73
    %vm76 = vcmp.eq.f32.partialorder %v71, 0.0
    %v77 = vand.u32 %v71, 2147483648
    %v78 = vsel %vm76, %v77, %v75
    %v79 = vmax.f32 %v67, 1e-12
    %v80 = vmax.f32 %v78, 1e-12
    %v81 = vmul.f32 %v79, %v80
    %v82 = vrcp.pop %v81
    %v83 = vmul.f32 %v56, %v82
    %s84 = sadd.s32 0, 0
    %s85 = smul.u32 %s84, 8
    %v86 = vlaneseq
    %v87 = vshrl.u32 %v86, 7
    %v88 = vstv %s85
    %v89 = vadd.s32 %v88, %v87
    %vm90 = vcmp.lt.s32.totalorder %v89, 8
    %v91 = vsel %vm90, %v83, 0.0
    %v92 = vld [vmem:[#allocation2] sm:$0x1]
    %vm93 = vcmask 7168
    %v94 = vsel %vm93, %v91, 0.0
    %95 = vadd.xlane.f32.xlu0 %v94
    %v96 = vpop.xlane.xlu0 %95
    %v97 = vrot.slane %v96, 4
    %v98 = vadd.f32 %v96, %v97
    %v99 = vrot.slane %v98, 2
    %v100 = vadd.f32 %v98, %v99
    %v101 = vrot.slane %v100, 1
    %v102 = vadd.f32 %v100, %v101
    %s103 = vtos %v102
    %v104 = vstv %s103
    %v105 = vadd.f32 %v92, %v104
    %vm106 = vcmask 0
    %107 = vst.msk [vmem:[#allocation2] sm:$0x1] %vm106, %v105
    // Predicated region
    $region22: #{tpu_custom_call.1} parent=1 // pred_check
      %p108 = pneg %p44
    $region23: #{tpu_custom_call.1} parent=1 // pred_check_branch
      %110 = sbr.rel (%p108) target = $region25
    $region24: #{tpu_custom_call.1} parent=1 // pred_region
      %v111 = vld [vmem:[#allocation2] sm:$0x1]
      %v113 = vlaneseq
      %v114 = vshrl.u32 %v113, 7
      %v115 = vsub.s32 0, %v114
      %v116 = vrot.slane %v111, %v115
      %117 = vset.pattern.permute.xlu0 0
      %118 = vperm.xlu0 %117, %v116
      %v119 = vpop.permute.xlu0 %118
      %121 = vst [vmem:[#allocation8] sm:$0xff] %v119
    $region25: #{tpu_custom_call.1} parent=1 // pred_fallthru
      _
    // Predicated region
    $region26: #{tpu_custom_call.1} parent=1 // pred_check
      _
    $region27: #{tpu_custom_call.1} parent=1 // pred_check_branch
      %123 = sbr.rel (0) target = $region29
    $region28: #{tpu_custom_call.1} parent=1 // pred_region
      %s125 = ssub.s32 128, 128
      %126 = vsyncadd [#allocation5], %s125
      %s128 = sshll.u32 [#allocation8], 4
      %s129 = int_to_ptr.vmem [resolvable:$true] %s128
      %131 = dma.vmem_to_hbm [thread:$0]  %s129, 128, %s2, [#allocation5]
    $region29: #{tpu_custom_call.1} parent=1 // pred_fallthru
      _
    // Predicated region
    $region30: #{tpu_custom_call.1} parent=1 // pred_check
      _
    $region31: #{tpu_custom_call.1} parent=1 // pred_check_branch
      %133 = sbr.rel (0) target = $region33
    $region32: #{tpu_custom_call.1} parent=1 // pred_region
      %134 = dma.done [#allocation5], 128
    $region33: #{tpu_custom_call.1} parent=1 // pred_fallthru
      _
    %135 = vsyncpa [#allocation4], 1
    %136 = vsyncpa [#allocation7], 1
    %137 = vsyncpa [#allocation5], 1

</llo_original>
